<compile_context>
chip_gen: v6e
topology: v6e:2x2x1
jax: 0.10.0
libtpu: 0.0.40
codegen_flags: <defaults>
</compile_context>

<pallas_src>
import numpy as np
import jax
import jax.numpy as jnp
from jax.experimental import pallas as pl
from jax.experimental.pallas import tpu as pltpu


# ----------------------------------------------------------------------------
# buildupfc: identical semantics to the PyTorch/numpy helper (host-side table).
# ----------------------------------------------------------------------------
def buildupfc(n_iter, Btype='expo', n_stop=25000, n_up=5000, start=-5.0, stop=0.0):
    if Btype == 'expo':
        Llow = np.ones(n_up) * 10 ** start
        Lhigh = np.ones(n_iter - n_stop) * 10 ** stop
        Lramp = np.ones(n_stop - n_up) * 10 ** np.linspace(start, stop, n_stop - n_up)
    else:
        Llow = np.ones(n_up) * start
        Lhigh = np.ones(n_iter - n_stop) * stop
        Lramp = np.linspace(start, stop, n_stop - n_up)
    return np.concatenate((Llow, Lramp, Lhigh))


# ----------------------------------------------------------------------------
# Pallas kernel: scaled mean cross-entropy over lane-dense (C, TL) blocks.
#   loss = (coef/B) * sum_b( logsumexp(logits[:, b]) - logits[target[b], b] )
# ----------------------------------------------------------------------------
def _make_ce_kernel(B, TL, num_tiles):
    def _ce_kernel(coef_ref, logits_ref, targets_ref, out_ref, acc_ref):
        i = pl.program_id(0)

        @pl.when(i == 0)
        def _init():
            acc_ref[...] = jnp.zeros_like(acc_ref)

        # widen in-kernel (free on the VPU); logits arrive in their native dtype
        logits = logits_ref[...].astype(jnp.float32)           # (C, TL)
        targets = targets_ref[...]                              # (1, TL) int32

        # numerically-stable per-example (per-lane) logsumexp over the class
        # (sublane) axis — lane-dense result (1, TL)
        m = jnp.max(logits, axis=0, keepdims=True)               # (1, TL)
        lse = jnp.log(jnp.sum(jnp.exp(logits - m), axis=0, keepdims=True)) + m

        # target logit via sublane one-hot select + sum (no data-dependent gather)
        class_ids = jax.lax.broadcasted_iota(jnp.int32, logits.shape, 0)  # (C, TL)
        tgt_logit = jnp.sum(jnp.where(class_ids == targets, logits, 0.0),
                            axis=0, keepdims=True)                # (1, TL)

        per_example = lse - tgt_logit                             # (1, TL)

        if num_tiles > 1:
            # mask padded lanes of the last partial tile; the select discards any
            # NaN/Inf computed from undefined padded data.  (Single-tile path has
            # block == full array, so no padding exists and no mask is emitted.)
            lane_ids = i * TL + jax.lax.broadcasted_iota(jnp.int32, (1, TL), 1)
            per_example = jnp.where(lane_ids < B, per_example, 0.0)

        # lane-partial accumulation: steady state is a single VPU add; the one
        # cross-lane XLU reduce + coef scale is deferred to the finalize step.
        acc_ref[...] += per_example

        @pl.when(i == num_tiles - 1)
        def _finalize():
            # coef_ref[0] already holds (L[step] * acc_ce_coef) / B
            out_ref[0, 0] = jnp.sum(acc_ref[...]) * coef_ref[0]

    return _ce_kernel


def pallas_scaled_cross_entropy(logits, targets, coef_over_b):
    """logits: (B, C) any float dtype, targets: (B,) int, coef_over_b: (1,) f32."""
    B, C = logits.shape
    itemsize = jnp.dtype(logits.dtype).itemsize

    # Lane-dense layout: batch on the lane axis, classes on the sublane axis.
    logits_cb = logits.T                                  # (C, B)
    targets_row = targets.reshape(1, B).astype(jnp.int32)

    # Byte-based tile: one grid step unless the batch is enormous.  2 MiB per
    # logits buffer keeps the double-buffered working set + f32 widening
    # temporaries well under the v5e 16 MiB scoped-VMEM default (and v7x's
    # 64 MiB physical VMEM) for any C.
    TILE_BYTES = 2 * 1024 * 1024
    max_lanes = max(128, ((TILE_BYTES // (C * itemsize)) // 128) * 128)
    if B <= max_lanes:
        TL, num_tiles = B, 1          # block == full array dims: always legal
    else:
        TL = max_lanes                # multiple of 128; last tile masked in-kernel
        num_tiles = pl.cdiv(B, TL)

    out = pl.pallas_call(
        _make_ce_kernel(B, TL, num_tiles),
        out_shape=jax.ShapeDtypeStruct((1, 1), jnp.float32),
        grid=(num_tiles,),
        in_specs=[
            pl.BlockSpec(memory_space=pltpu.SMEM),          # coef/B scalar (resident)
            pl.BlockSpec((C, TL), lambda i: (0, i)),        # lane-dense logits tile
            pl.BlockSpec((1, TL), lambda i: (0, i)),        # lane-dense targets tile
        ],
        out_specs=pl.BlockSpec(memory_space=pltpu.SMEM),    # (1,1) scalar result
        scratch_shapes=[pltpu.VMEM((1, TL), jnp.float32)],  # lane-partial NLL acc
        compiler_params=pltpu.CompilerParams(
            dimension_semantics=("arbitrary",)),            # grid axis is a reduction
        cost_estimate=pl.CostEstimate(
            flops=6 * B * C + 4 * B,
            transcendentals=B * C + B,
            bytes_accessed=B * C * itemsize + 4 * B + 8),
    )(coef_over_b, logits_cb, targets_row)
    return out[0, 0]


# ----------------------------------------------------------------------------
# DLoss equivalent
# ----------------------------------------------------------------------------
class DLossPallas:
    def __init__(self, preprocess_config, model_config, train_config):
        self.n_accent_classes = model_config['accent_encoder']['n_classes']
        self.n_speaker_classes = model_config['speaker_encoder']['n_classes']
        self.acc_ce_lambda = model_config['accent_classifier']['lambda']
        self.spk_ce_lambda = model_config['speaker_classifier']['lambda']
        self.n_iter = train_config['step']['total_step']
        self.n_stop = train_config['linbuildce']['n_stop']
        self.n_up = train_config['linbuildce']['n_up']
        self.stop = train_config['linbuildce']['stop']
        self.start = train_config['linbuildce']['start']
        self.CEBtype = train_config['linbuildce']['type']
        self.acc_ce_coef = train_config['coeffs']['acc_ce']
        self.spk_ce_coef = train_config['coeffs']['spk_ce']
        self.L = buildupfc(self.n_iter, self.CEBtype, self.n_stop, self.n_up,
                           start=self.start, stop=self.stop)

        # Device-resident coefficient table + jitted loss path: no host-side
        # L[step] lookup and no per-step eager dispatch of transpose/reshape/
        # pallas_call.  NOTE: under jit, L_dev[step] uses clamped-gather
        # semantics (step >= total_step reuses the last coefficient instead of
        # raising like NumPy indexing would).
        L_dev = jnp.asarray(self.L, dtype=jnp.float32)
        acc_ce_coef = jnp.float32(self.acc_ce_coef)

        def _loss(acc_prob, acc_id, step):
            B = acc_prob.shape[0]
            coef = L_dev[step] * acc_ce_coef               # on-device ramp lookup
            coef_over_b = (coef / jnp.float32(B)).reshape(1)
            return pallas_scaled_cross_entropy(acc_prob, acc_id.reshape(-1),
                                               coef_over_b)

        self._loss_jit = jax.jit(_loss)

    def forward(self, inputs, predictions, step):
        mel_target, acc_id, spk_id = inputs[0], inputs[1], inputs[2]
        acc_prob = predictions                              # logits (B, n_accent_classes)
        # mel_target.requires_grad = False -> no-op in JAX (arrays are immutable)
        acc_ce_loss = self._loss_jit(acc_prob, acc_id, jnp.int32(step))
        total_loss = acc_ce_loss
        return (total_loss, acc_ce_loss)


# ----------------------------------------------------------------------------
# Driver
# ----------------------------------------------------------------------------
if __name__ == "__main__":
    model_config = {
        'accent_encoder': {'n_classes': 8},
        'speaker_encoder': {'n_classes': 4},
        'accent_classifier': {'lambda': 1.0},
        'speaker_classifier': {'lambda': 1.0},
    }
    train_config = {
        'step': {'total_step': 30000},
        'linbuildce': {'n_stop': 25000, 'n_up': 5000,
                       'start': -5.0, 'stop': 0.0, 'type': 'expo'},
        'coeffs': {'acc_ce': 1.0, 'spk_ce': 1.0},
    }
    preprocess_config = {}

    C = model_config['accent_encoder']['n_classes']
    loss_mod = DLossPallas(preprocess_config, model_config, train_config)

    def ref_loss(acc_prob, acc_id, step):
        coef = float(loss_mod.L[step]) * float(loss_mod.acc_ce_coef)
        logp = jax.nn.log_softmax(acc_prob.astype(jnp.float32), axis=-1)
        return -jnp.mean(jnp.take_along_axis(logp, acc_id[:, None], axis=-1)) * coef

    key = jax.random.PRNGKey(0)
    k1, k2, k3, k4 = jax.random.split(key, 4)

    # primary small-shape check (B=4)
    B = 4
    mel_target = jax.random.normal(k1, (B, 16, 32), dtype=jnp.float32)  # unused by loss
    acc_id = jax.random.randint(k2, (B,), 0, C, dtype=jnp.int32)
    spk_id = jax.random.randint(k3, (B,), 0, 4, dtype=jnp.int32)        # unused by loss
    acc_prob = jax.random.normal(k4, (B, C), dtype=jnp.float32)         # logits

    step = 10000  # somewhere on the ramp
    total_loss, acc_ce_loss = loss_mod.forward(
        (mel_target, acc_id, spk_id), acc_prob, step)
    jax.block_until_ready(total_loss)

    ref = ref_loss(acc_prob, acc_id, step)
    assert jnp.allclose(total_loss, ref, rtol=1e-5, atol=1e-6), (total_loss, ref)

    # second call at a different step exercises the jitted cache (no recompile)
    t2, _ = loss_mod.forward((mel_target, acc_id, spk_id), acc_prob, 27000)
    jax.block_until_ready(t2)
    ref2 = ref_loss(acc_prob, acc_id, 27000)
    assert jnp.allclose(t2, ref2, rtol=1e-5, atol=1e-6), (t2, ref2)

    # different (still small, odd) batch size exercises the lane-dense path
    # with a fresh block shape
    B2 = 6
    acc_id2 = jax.random.randint(k2, (B2,), 0, C, dtype=jnp.int32)
    acc_prob2 = jax.random.normal(k3, (B2, C), dtype=jnp.float32)
    t3, _ = loss_mod.forward((mel_target, acc_id2, spk_id), acc_prob2, step)
    jax.block_until_ready(t3)
    ref3 = ref_loss(acc_prob2, acc_id2, step)
    assert jnp.allclose(t3, ref3, rtol=1e-5, atol=1e-6), (t3, ref3)

    print("KERNEL_OK")
</pallas_src>

<mosaic_0001>
module attributes {stable_mosaic.version = 11 : i64} {
  func.func @_ce_kernel(%arg0: i32, %arg1: memref<1xf32, #tpu.memory_space<smem>>, %arg2: memref<8x4xf32, #tpu.memory_space<vmem>>, %arg3: memref<1x4xi32, #tpu.memory_space<vmem>>, %arg4: memref<1x1xf32, #tpu.memory_space<smem>>, %arg5: memref<1x4xf32, #tpu.memory_space<vmem>>) attributes {dimension_semantics = [#tpu.dimension_semantics<arbitrary>], iteration_bounds = array<i64: 1>, scalar_prefetch = 0 : i64, scratch_operands = 1 : i64, tpu.core_type = #tpu.core_type<tc>, window_params = [{transform_indices = @transform_0, window_bounds = array<i64: 1>}, {transform_indices = @transform_1, window_bounds = array<i64: 8, 4>}, {transform_indices = @transform_2, window_bounds = array<i64: 1, 4>}, {transform_indices = @transform_3, window_bounds = array<i64: 1, 1>}]} {
    %c0_i32 = arith.constant 0 : i32
    %0 = arith.cmpi eq, %arg0, %c0_i32 : i32
    %1 = arith.extui %0 : i1 to i32
    %c0_i32_0 = arith.constant 0 : i32
    %2 = arith.cmpi ne, %1, %c0_i32_0 : i32
    scf.if %2 {
      %cst_13 = arith.constant 0.000000e+00 : f32
      %28 = vector.broadcast %cst_13 : f32 to vector<1x4xf32>
      %c0_14 = arith.constant 0 : index
      %c0_15 = arith.constant 0 : index
      %29 = vector.load %arg5[%c0_14, %c0_15] : memref<1x4xf32, #tpu.memory_space<vmem>>, vector<1x4xf32>
      tpu.vector_store %arg5[%c0_14, %c0_15], %28 {strides = array<i32>} : memref<1x4xf32, #tpu.memory_space<vmem>>, vector<1x4xf32>,
    } else {
    }
    %c0 = arith.constant 0 : index
    %c0_1 = arith.constant 0 : index
    %3 = vector.load %arg2[%c0, %c0_1] : memref<8x4xf32, #tpu.memory_space<vmem>>, vector<8x4xf32>
    %c0_2 = arith.constant 0 : index
    %c0_3 = arith.constant 0 : index
    %4 = vector.load %arg3[%c0_2, %c0_3] : memref<1x4xi32, #tpu.memory_space<vmem>>, vector<1x4xi32>
    %cst = arith.constant dense<0xFF800000> : vector<4xf32>
    %5 = vector.multi_reduction <maximumf>, %3, %cst [0] : vector<8x4xf32> to vector<4xf32>
    %6 = vector.shape_cast %5 : vector<4xf32> to vector<1x4xf32>
    %7 = vector.broadcast %6 : vector<1x4xf32> to vector<8x4xf32>
    %8 = arith.subf %3, %7 : vector<8x4xf32>
    %9 = math.exp %8 : vector<8x4xf32>
    %cst_4 = arith.constant dense<0.000000e+00> : vector<4xf32>
    %10 = vector.multi_reduction <add>, %9, %cst_4 [0] : vector<8x4xf32> to vector<4xf32>
    %11 = vector.shape_cast %10 : vector<4xf32> to vector<1x4xf32>
    %12 = math.log %11 : vector<1x4xf32>
    %13 = arith.addf %12, %6 : vector<1x4xf32>
    %14 = tpu.iota {dimensions = array<i32: 0>} : vector<8x4xi32>
    %15 = vector.broadcast %4 : vector<1x4xi32> to vector<8x4xi32>
    %16 = arith.cmpi eq, %14, %15 : vector<8x4xi32>
    %cst_5 = arith.constant 0.000000e+00 : f32
    %17 = vector.broadcast %cst_5 : f32 to vector<8x4xf32>
    %18 = arith.select %16, %3, %17 : vector<8x4xi1>, vector<8x4xf32>
    %cst_6 = arith.constant dense<0.000000e+00> : vector<4xf32>
    %19 = vector.multi_reduction <add>, %18, %cst_6 [0] : vector<8x4xf32> to vector<4xf32>
    %20 = vector.shape_cast %19 : vector<4xf32> to vector<1x4xf32>
    %21 = arith.subf %13, %20 : vector<1x4xf32>
    %c0_7 = arith.constant 0 : index
    %c0_8 = arith.constant 0 : index
    %22 = vector.load %arg5[%c0_7, %c0_8] : memref<1x4xf32, #tpu.memory_space<vmem>>, vector<1x4xf32>
    %23 = arith.addf %22, %21 : vector<1x4xf32>
    %c0_9 = arith.constant 0 : index
    %c0_10 = arith.constant 0 : index
    %24 = vector.load %arg5[%c0_9, %c0_10] : memref<1x4xf32, #tpu.memory_space<vmem>>, vector<1x4xf32>
    tpu.vector_store %arg5[%c0_9, %c0_10], %23 {strides = array<i32>} : memref<1x4xf32, #tpu.memory_space<vmem>>, vector<1x4xf32>,
    %c0_i32_11 = arith.constant 0 : i32
    %25 = arith.cmpi eq, %arg0, %c0_i32_11 : i32
    %26 = arith.extui %25 : i1 to i32
    %c0_i32_12 = arith.constant 0 : i32
    %27 = arith.cmpi ne, %26, %c0_i32_12 : i32
    scf.if %27 {
      %c0_13 = arith.constant 0 : index
      %c0_14 = arith.constant 0 : index
      %28 = vector.load %arg5[%c0_13, %c0_14] : memref<1x4xf32, #tpu.memory_space<vmem>>, vector<1x4xf32>
      %29 = vector.shape_cast %28 : vector<1x4xf32> to vector<1x1x4xf32>
      %cst_15 = arith.constant dense<0.000000e+00> : vector<1xf32>
      %30 = vector.multi_reduction <add>, %29, %cst_15 [1, 2] : vector<1x1x4xf32> to vector<1xf32>
      %31 = vector.shape_cast %30 : vector<1xf32> to vector<1x1x1xf32>
      %32 = vector.extract %31[0, 0, 0] : f32 from vector<1x1x1xf32>
      %c0_16 = arith.constant 0 : index
      %33 = memref.load %arg1[%c0_16] : memref<1xf32, #tpu.memory_space<smem>>
      %34 = arith.mulf %32, %33 : f32
      %c0_17 = arith.constant 0 : index
      %c0_18 = arith.constant 0 : index
      %35 = memref.load %arg4[%c0_17, %c0_18] : memref<1x1xf32, #tpu.memory_space<smem>>
      memref.store %34, %arg4[%c0_17, %c0_18] : memref<1x1xf32, #tpu.memory_space<smem>>
    } else {
    }
    return
  }
  func.func @transform_0(%arg0: i32) -> i32 {
    %c0_i32 = arith.constant 0 : i32
    %c0_i32_0 = arith.constant 0 : i32
    return %c0_i32 : i32
  }
  func.func @transform_1(%arg0: i32) -> (i32, i32) {
    %c0_i32 = arith.constant 0 : i32
    %c0_i32_0 = arith.constant 0 : i32
    return %c0_i32, %arg0 : i32, i32
  }
  func.func @transform_2(%arg0: i32) -> (i32, i32) {
    %c0_i32 = arith.constant 0 : i32
    %c0_i32_0 = arith.constant 0 : i32
    return %c0_i32, %arg0 : i32, i32
  }
  func.func @transform_3(%arg0: i32) -> (i32, i32) {
    %c0_i32 = arith.constant 0 : i32
    %c0_i32_0 = arith.constant 0 : i32
    %c0_i32_1 = arith.constant 0 : i32
    return %c0_i32, %c0_i32_0 : i32, i32
  }
}

</mosaic_0001>

<llo_original>
// kernel: _loss.1
$region0: #{_loss.1}
  #allocation0 [shape = 'u32[]', space=smem, size = 0x4, offset = 0x4, fixed_abs, tag = 'smem constant byte address 0x4 - core index']
  #allocation1 [shape = 'u32[144,128]{1,0:T(1,128)}', space=vmem, size = 0x12000, scoped, tag = 'internal scratch']
  #allocation2 [shape = 'f32[1,4]{1,0:T(1,128)}', space=vmem, size = 0x200, scoped, tag = 'scratch operand']
  #allocation3 [shape = 'f32[1]{0:T(128)S(6)}', space=smem, size = 0x200, scoped, tag = 'scoped memory for _loss.1']
  %s0 = inlined_call_operand.<no memory space> [shape: f32[1], index: 0, kind: input, shape index: {}]
  %s1 = inlined_call_operand.vmem [shape: f32[8,4], index: 1, kind: input, shape index: {}]
  %s2 = inlined_call_operand.vmem [shape: s32[1,4], index: 2, kind: input, shape index: {}]
  %s3 = inlined_call_operand.hbm [shape: f32[1,1], index: 3, kind: output, shape index: {}]
  %s4 = sld [smem:[#allocation0]]
  $region30: #{_loss.1} parent=0
    _
  %s6 = ssub.s32 1, %s4
  %s7 = scalar_select 0, %s6, %s4
  %8 = sst [smem:[#allocation3]] %s0
  $region1: #{_loss.1} parent=0
    #allocation4 [shape = 'u8[512]{0}', space=smem, size = 0x200, scoped, tag = 'output window, operand 0, single buffered']
    #allocation5 [shape = 's32[1]{0}', space=sflag, size = 0x4, scoped, tag = 'scoped memory for _loss.1']
    %9 = vsyncpa [#allocation5], 0
    // Predicated region
    $region2: #{_loss.1} parent=1 // pred_check
      _
    $region3: #{_loss.1} parent=1 // pred_check_branch
      %11 = sbr.rel (0) target = $region5
    $region4: #{_loss.1} parent=1 // pred_region
      _
    $region5: #{_loss.1} parent=1 // pred_fallthru
      _
    // Predicated region
    $region6: #{_loss.1} parent=1 // pred_check
      _
    $region7: #{_loss.1} parent=1 // pred_check_branch
      %13 = sbr.rel (0) target = $region9
    $region8: #{_loss.1} parent=1 // pred_region
      _
    $region9: #{_loss.1} parent=1 // pred_fallthru
      _
    // Predicated region
    $region10: #{_loss.1} parent=1 // pred_check
      _
    $region11: #{_loss.1} parent=1 // pred_check_branch
      %15 = sbr.rel (0) target = $region13
    $region12: #{_loss.1} parent=1 // pred_region
      _
    $region13: #{_loss.1} parent=1 // pred_fallthru
      _
    %p16 = scmp.eq.s32.totalorder 0, 0
    // Predicated region
    $region14: #{_loss.1} parent=1 // pred_check
      %p17 = pneg %p16
    $region15: #{_loss.1} parent=1 // pred_check_branch
      %19 = sbr.rel (%p17) target = $region17
    $region16: #{_loss.1} parent=1 // pred_region
      %vm20 = vcmask 24576
      %21 = vst.msk [vmem:[#allocation2] sm:$0x1] %vm20, 0.0
    $region17: #{_loss.1} parent=1 // pred_fallthru
      _
    %v22 = vld [vmem:[%s1] sm:$0xff]
    %v23 = vld [vmem:[%s2] sm:$0x1]
    %vm24 = vcmask 31744
    %v25 = vsel %vm24, %v22, -inf
    %v26 = vrot.slane %v25, 4
    %v27 = vmax.f32 %v25, %v26
    %v28 = vrot.slane %v27, 2
    %v29 = vmax.f32 %v27, %v28
    %v30 = vrot.slane %v29, 1
    %v31 = vmax.f32 %v29, %v30
    %v32 = vsub.f32 %v22, %v31
    %v33 = vmul.f32 %v32, 1.442695
    %v34 = vpow.pop %v33
    %v35 = vsel %vm24, %v34, 0.0
    %v36 = vrot.slane %v35, 4
    %v37 = vadd.f32 %v35, %v36
    %v38 = vrot.slane %v37, 2
    %v39 = vadd.f32 %v37, %v38
    %v40 = vrot.slane %v39, 1
    %v41 = vadd.f32 %v39, %v40
    %v42 = vlog2.pop %v41
    %v43 = vmul.f32 %v42, 0.6931472
    %v44 = vadd.f32 %v43, %v31
    %v45 = vlaneseq
    %v46 = vshrl.u32 %v45, 7
    %v47 = vlaneseq
    %v48 = vshrl.u32 %v47, 7
    %v49 = vsub.s32 0, %v48
    %v50 = vrot.slane %v23, %v49
    %vm51 = vcmp.eq.s32.totalorder %v46, %v50
    %v52 = vsel %vm51, %v22, 0.0
    %v53 = vsel %vm24, %v52, 0.0
    %v54 = vrot.slane %v53, 4
    %v55 = vadd.f32 %v53, %v54
    %v56 = vrot.slane %v55, 2
    %v57 = vadd.f32 %v55, %v56
    %v58 = vrot.slane %v57, 1
    %v59 = vadd.f32 %v57, %v58
    %v60 = vsub.f32 %v44, %v59
    %v61 = vld [vmem:[#allocation2] sm:$0x1]
    %v62 = vadd.f32 %v61, %v60
    %vm63 = vcmask 24576
    %64 = vst.msk [vmem:[#allocation2] sm:$0x1] %vm63, %v62
    // Predicated region
    $region18: #{_loss.1} parent=1 // pred_check
      %p65 = pneg %p16
    $region19: #{_loss.1} parent=1 // pred_check_branch
      %67 = sbr.rel (%p65) target = $region21
    $region20: #{_loss.1} parent=1 // pred_region
      %v68 = vld [vmem:[#allocation2] sm:$0x1]
      %v69 = vsel %vm63, %v68, 0.0
      %70 = vadd.xlane.f32.xlu0 %v69
      %v71 = vpop.xlane.xlu0 %70
      %v72 = vrot.slane %v71, 4
      %v73 = vadd.f32 %v71, %v72
      %v74 = vrot.slane %v73, 2
      %v75 = vadd.f32 %v73, %v74
      %v76 = vrot.slane %v75, 1
      %v77 = vadd.f32 %v75, %v76
      %s78 = vtos %v77
      %s79 = sld [smem:[#allocation3]]
      %s80 = smul.f32 %s78, %s79
      %s81 = scalar_lea.smem [#allocation4], 0
      %82 = sst [smem:[%s81]] %s80
    $region21: #{_loss.1} parent=1 // pred_fallthru
      _
    // Predicated region
    $region22: #{_loss.1} parent=1 // pred_check
      _
    $region23: #{_loss.1} parent=1 // pred_check_branch
      %84 = sbr.rel (0) target = $region25
    $region24: #{_loss.1} parent=1 // pred_region
      %s86 = ssub.s32 16, 16
      %87 = vsyncadd [#allocation5], %s86
      %90 = dma.smem_to_hbm [#allocation4], 16, %s3, [#allocation5]
    $region25: #{_loss.1} parent=1 // pred_fallthru
      _
    // Predicated region
    $region26: #{_loss.1} parent=1 // pred_check
      _
    $region27: #{_loss.1} parent=1 // pred_check_branch
      %92 = sbr.rel (0) target = $region29
    $region28: #{_loss.1} parent=1 // pred_region
      %93 = dma.done [#allocation5], 16
    $region29: #{_loss.1} parent=1 // pred_fallthru
      _
    %94 = sfence
    %95 = vsyncpa [#allocation5], 1

</llo_original>
